<compile_context>
chip_gen: v6e
topology: v6e:2x2x1
jax: 0.10.0
libtpu: 0.0.40
codegen_flags: <defaults>
</compile_context>

<pallas_src>
import functools

import jax
import jax.numpy as jnp
from jax.experimental import pallas as pl
from jax.experimental.pallas import tpu as pltpu


# ----------------------------------------------------------------------------
# helpers
# ----------------------------------------------------------------------------
def _round_up(x, m):
    return (x + m - 1) // m * m


def _pick_div(total, candidates):
    for c in candidates:
        if total % c == 0:
            return c
    return total


# ----------------------------------------------------------------------------
# Pallas kernels
# ----------------------------------------------------------------------------
def _fused_matmul_kernel(*refs, relu, has_res):
    """Tiled matmul with fused bias (+ residual) (+ ReLU) epilogue.

    Grid: (M/tm, N/tn, K/tk) with K innermost.  The f32 accumulator lives in a
    VMEM scratch; bias / residual / ReLU are applied once, at the last K step.
    """
    if has_res:
        a_ref, b_ref, bias_ref, res_ref, o_ref, acc_ref = refs
    else:
        a_ref, b_ref, bias_ref, o_ref, acc_ref = refs
        res_ref = None

    @pl.when(pl.program_id(2) == 0)
    def _init():
        acc_ref[...] = jnp.zeros_like(acc_ref)

    acc_ref[...] += jnp.dot(a_ref[...], b_ref[...],
                            preferred_element_type=jnp.float32)

    @pl.when(pl.program_id(2) == pl.num_programs(2) - 1)
    def _done():
        y = acc_ref[...] + bias_ref[...]          # (tm,tn) + (1,tn) broadcast
        if res_ref is not None:
            y = y + res_ref[...].astype(jnp.float32)
        if relu:
            y = jnp.maximum(y, 0.0)
        o_ref[...] = y.astype(o_ref.dtype)


@functools.lru_cache(maxsize=None)
def _get_matmul_kernel(relu, has_res):
    return functools.partial(_fused_matmul_kernel, relu=relu, has_res=has_res)


def _maxpool_kernel(*refs):
    # refs = 9 tap slabs (bm, C) + output (bm, C); VPU max tree, lane-dense.
    o_ref = refs[-1]
    m = refs[0][...].astype(jnp.float32)
    for t_ref in refs[1:-1]:
        m = jnp.maximum(m, t_ref[...].astype(jnp.float32))
    o_ref[...] = m.astype(o_ref.dtype)


def _global_avg_kernel(x_ref, o_ref):
    # x_ref: (N, H*W, tc) bf16 -> mean over spatial axis in f32.
    o_ref[...] = jnp.mean(x_ref[...].astype(jnp.float32), axis=1)


# ----------------------------------------------------------------------------
# Pallas wrappers
# ----------------------------------------------------------------------------
def fused_conv_matmul(a, w_pad, bias_pad, n_out, *, relu, residual=None):
    """a:(M,K) bf16 activations @ w_pad:(Kp,Np) bf16 BN-scaled weights.

    Returns a (M, n_out) bf16 slab with bias / residual / ReLU fused in the
    matmul epilogue.
    """
    M, K = a.shape
    Kp, Np = w_pad.shape

    # Tile selection: big MXU-friendly tiles; K innermost / "arbitrary".
    if M >= 1024:
        tm = 512
    elif M >= 256:
        tm = 256
    else:
        tm = _round_up(M, 8)
    Mp = _round_up(M, tm)
    tk = _pick_div(Kp, (512, 256, 128))
    tn = _pick_div(Np, (256, 128))

    a_p = a
    if (Mp, Kp) != (M, K):
        a_p = jnp.pad(a, ((0, Mp - M), (0, Kp - K)))

    in_specs = [
        pl.BlockSpec((tm, tk), lambda i, j, k: (i, k)),
        pl.BlockSpec((tk, tn), lambda i, j, k: (k, j)),
        pl.BlockSpec((1, tn), lambda i, j, k: (0, j)),
    ]
    inputs = [a_p, w_pad, bias_pad]
    if residual is not None:
        r_p = residual
        if r_p.shape != (Mp, Np):
            r_p = jnp.pad(residual, ((0, Mp - residual.shape[0]),
                                     (0, Np - residual.shape[1])))
        in_specs.append(pl.BlockSpec((tm, tn), lambda i, j, k: (i, j)))
        inputs.append(r_p)

    kernel = _get_matmul_kernel(bool(relu), residual is not None)
    out = pl.pallas_call(
        kernel,
        out_shape=jax.ShapeDtypeStruct((Mp, Np), jnp.bfloat16),
        grid_spec=pltpu.PrefetchScalarGridSpec(
            num_scalar_prefetch=0,
            grid=(Mp // tm, Np // tn, Kp // tk),
            in_specs=in_specs,
            out_specs=pl.BlockSpec((tm, tn), lambda i, j, k: (i, j)),
            scratch_shapes=[pltpu.VMEM((tm, tn), jnp.float32)]),
        compiler_params=pltpu.CompilerParams(
            dimension_semantics=("parallel", "parallel", "arbitrary")),
    )(*inputs)
    return out[:M, :n_out]


def maxpool_pallas(x, kh=3, kw=3, stride=2, padding=1):
    # NOTE: border padding uses 0, not -inf; safe only because the input is
    # post-ReLU (>= 0) — documented invariant.
    N, H, W, C = x.shape
    xp = jnp.pad(x, ((0, 0), (padding, padding), (padding, padding), (0, 0)))
    oh = (H + 2 * padding - kh) // stride + 1
    ow = (W + 2 * padding - kw) // stride + 1
    M = N * oh * ow
    Mp = _round_up(M, 8)

    taps = []
    for i in range(kh):
        for j in range(kw):
            t = xp[:, i:i + stride * oh:stride,
                   j:j + stride * ow:stride, :].reshape(M, C)
            if Mp != M:
                t = jnp.pad(t, ((0, Mp - M), (0, 0)))
            taps.append(t)

    bm = _pick_div(Mp, (1024, 512, 256, 128))
    out = pl.pallas_call(
        _maxpool_kernel,
        out_shape=jax.ShapeDtypeStruct((Mp, C), x.dtype),
        grid=(Mp // bm,),
        in_specs=[pl.BlockSpec((bm, C), lambda m: (m, 0))] * (kh * kw),
        out_specs=pl.BlockSpec((bm, C), lambda m: (m, 0)),
        compiler_params=pltpu.CompilerParams(
            dimension_semantics=("parallel",)),
    )(*taps)
    return out[:M].reshape(N, oh, ow, C)


def global_avgpool_pallas(x):
    N, H, W, C = x.shape
    xr = x.reshape(N, H * W, C)
    tc = _pick_div(C, (256, 128))
    return pl.pallas_call(
        _global_avg_kernel,
        out_shape=jax.ShapeDtypeStruct((N, C), jnp.float32),
        grid=(C // tc,),
        in_specs=[pl.BlockSpec((N, H * W, tc), lambda c: (0, 0, c))],
        out_specs=pl.BlockSpec((N, tc), lambda c: (0, c)),
        compiler_params=pltpu.CompilerParams(
            dimension_semantics=("parallel",)),
    )(xr)


# ----------------------------------------------------------------------------
# im2col glue (plain JAX) + conv built on the fused matmul
# ----------------------------------------------------------------------------
# TODO(synk): fold the kh*kw taps of 3x3 convs into the matmul K/accumulation
# grid (or a manual-DMA direct-conv kernel) to avoid materializing the 9x
# im2col patch slab in HBM; kept as JAX glue here for robustness.
def _im2col(x, kh, kw, stride, padding):
    """x: NHWC -> patches (N, oh, ow, kh*kw, C)."""
    N, H, W, C = x.shape
    xp = jnp.pad(x, ((0, 0), (padding, padding), (padding, padding), (0, 0)))
    oh = (H + 2 * padding - kh) // stride + 1
    ow = (W + 2 * padding - kw) // stride + 1
    cols = []
    for i in range(kh):
        for j in range(kw):
            cols.append(xp[:, i:i + stride * oh:stride,
                           j:j + stride * ow:stride, :])
    patches = jnp.stack(cols, axis=3)
    return patches, oh, ow


def conv_bn(x, layer, *, relu, residual=None):
    """Fused conv + BN (+ residual) (+ ReLU).  x: NHWC bf16.

    Returns a (N*oh*ow, cout) bf16 slab and the output dims.
    """
    kh, kw = layer["kh"], layer["kw"]
    stride, padding = layer["stride"], layer["pad"]
    N, H, W, C = x.shape
    if kh == 1 and kw == 1 and stride == 1 and padding == 0:
        a = x.reshape(N * H * W, C)
        oh, ow = H, W
    else:
        patches, oh, ow = _im2col(x, kh, kw, stride, padding)
        a = patches.reshape(N * oh * ow, kh * kw * C)
    out = fused_conv_matmul(a, layer["w"], layer["bias"], layer["cout"],
                            relu=relu, residual=residual)
    return out, (N, oh, ow)


# ----------------------------------------------------------------------------
# ResNet-50 (deterministic synthetic parameters, BN folded into weights)
# ----------------------------------------------------------------------------
_RESNET50_STAGES = [(64, 3, 1), (128, 4, 2), (256, 6, 2), (512, 3, 2)]


def _key_stream(key):
    i = 0
    while True:
        i += 1
        yield jax.random.fold_in(key, i)


def _make_conv_bn(ks, kh, kw, cin, cout, stride, pad):
    fan_in = kh * kw * cin
    w = (jax.random.normal(next(ks), (fan_in, cout), jnp.float32)
         / jnp.sqrt(jnp.float32(fan_in)))
    gamma = 1.0 + 0.1 * jax.random.normal(next(ks), (cout,), jnp.float32)
    beta = 0.1 * jax.random.normal(next(ks), (cout,), jnp.float32)
    mean = 0.1 * jax.random.normal(next(ks), (cout,), jnp.float32)
    var = 1.0 + 0.1 * jnp.abs(jax.random.normal(next(ks), (cout,), jnp.float32))
    scale = gamma / jnp.sqrt(var + 1e-5)
    bias = beta - mean * scale
    # Fold BN scale into the weight columns; bias is added once in the epilogue.
    w = w * scale[None, :]
    # Pre-pad to MXU tile multiples once, store as bf16.
    kp = _round_up(fan_in, 128)
    np_ = _round_up(cout, 128)
    w_pad = jnp.pad(w, ((0, kp - fan_in), (0, np_ - cout))).astype(jnp.bfloat16)
    bias_pad = jnp.pad(bias, (0, np_ - cout)).reshape(1, np_)
    return {"w": w_pad, "bias": bias_pad, "kh": kh, "kw": kw,
            "stride": stride, "pad": pad, "cout": cout}


def init_resnet50_params(key):
    ks = _key_stream(key)
    params = {"stem": _make_conv_bn(ks, 7, 7, 3, 64, 2, 3), "layers": []}
    in_c = 64
    for width, blocks, stride in _RESNET50_STAGES:
        layer = []
        for b in range(blocks):
            s = stride if b == 0 else 1
            blk = {
                "conv1": _make_conv_bn(ks, 1, 1, in_c, width, 1, 0),
                "conv2": _make_conv_bn(ks, 3, 3, width, width, s, 1),
                "conv3": _make_conv_bn(ks, 1, 1, width, width * 4, 1, 0),
                "down": None,
            }
            if s != 1 or in_c != width * 4:
                blk["down"] = _make_conv_bn(ks, 1, 1, in_c, width * 4, s, 0)
            layer.append(blk)
            in_c = width * 4
        params["layers"].append(layer)
    return params


def bottleneck_forward(x, blk):
    N, H, W, Cin = x.shape

    # shortcut path (conv1x1 + BN fused) or identity
    if blk["down"] is not None:
        identity2d, _ = conv_bn(x, blk["down"], relu=False)
    else:
        identity2d = x.reshape(N * H * W, Cin)

    # main path: 1x1 -> 3x3(stride) -> 1x1, all with BN fused into the matmul
    y2d, _ = conv_bn(x, blk["conv1"], relu=True)
    width = blk["conv1"]["cout"]
    y = y2d.reshape(N, H, W, width)

    y2d, (_, oh, ow) = conv_bn(y, blk["conv2"], relu=True)
    y = y2d.reshape(N, oh, ow, width)

    # conv3 + BN + residual add + ReLU all fused into one matmul epilogue.
    out2d, _ = conv_bn(y, blk["conv3"], relu=True, residual=identity2d)
    return out2d.reshape(N, oh, ow, blk["conv3"]["cout"])


def feature_extractor_forward(x_nchw, params):
    """Equivalent of FeatureExtractor(resnet50 with fc=Identity)(x)."""
    x = jnp.transpose(x_nchw, (0, 2, 3, 1)).astype(jnp.bfloat16)  # NCHW->NHWC

    # stem: conv7x7/2 + BN + ReLU (fused) + maxpool3x3/2
    y2d, (N, oh, ow) = conv_bn(x, params["stem"], relu=True)
    x = y2d.reshape(N, oh, ow, params["stem"]["cout"])
    x = maxpool_pallas(x)

    for layer in params["layers"]:
        for blk in layer:
            x = bottleneck_forward(x, blk)

    feats = global_avgpool_pallas(x)  # (N, 2048) f32; backbone.fc is Identity
    return feats


# ----------------------------------------------------------------------------
if __name__ == "__main__":
    key = jax.random.PRNGKey(0)
    params = init_resnet50_params(jax.random.fold_in(key, 1))
    # ResNet-50 expects 3 input channels; small 16x16 spatial, batch 2.
    x = jax.random.normal(jax.random.fold_in(key, 2), (2, 3, 16, 16),
                          jnp.float32)

    feats = feature_extractor_forward(x, params)
    feats = jax.block_until_ready(feats)

    assert feats.shape == (2, 2048), feats.shape
    assert bool(jnp.all(jnp.isfinite(feats)))
    print("KERNEL_OK")
</pallas_src>

<mosaic_0001>
module attributes {stable_mosaic.version = 11 : i64} {
  func.func @_fused_matmul_kernel(%arg0: i32, %arg1: i32, %arg2: i32, %arg3: memref<128x256xbf16, #tpu.memory_space<vmem>>, %arg4: memref<256x128xbf16, #tpu.memory_space<vmem>>, %arg5: memref<1x128xf32, #tpu.memory_space<vmem>>, %arg6: memref<128x128xbf16, #tpu.memory_space<vmem>>, %arg7: memref<128x128xf32, #tpu.memory_space<vmem>>) attributes {dimension_semantics = [#tpu.dimension_semantics<parallel>, #tpu.dimension_semantics<parallel>, #tpu.dimension_semantics<arbitrary>], iteration_bounds = array<i64: 1, 1, 1>, scalar_prefetch = 0 : i64, scratch_operands = 1 : i64, tpu.core_type = #tpu.core_type<tc>, window_params = [{transform_indices = @transform_0, window_bounds = array<i64: 128, 256>}, {transform_indices = @transform_1, window_bounds = array<i64: 256, 128>}, {transform_indices = @transform_2, window_bounds = array<i64: 1, 128>}, {transform_indices = @transform_3, window_bounds = array<i64: 128, 128>}]} {
    %c0_i32 = arith.constant 0 : i32
    %0 = arith.cmpi eq, %arg2, %c0_i32 : i32
    %1 = arith.extui %0 : i1 to i32
    %c0_i32_0 = arith.constant 0 : i32
    %2 = arith.cmpi ne, %1, %c0_i32_0 : i32
    scf.if %2 {
      %cst_10 = arith.constant 0.000000e+00 : f32
      %12 = vector.broadcast %cst_10 : f32 to vector<128x128xf32>
      %c0_11 = arith.constant 0 : index
      %c0_12 = arith.constant 0 : index
      %13 = vector.load %arg7[%c0_11, %c0_12] : memref<128x128xf32, #tpu.memory_space<vmem>>, vector<128x128xf32>
      tpu.vector_store %arg7[%c0_11, %c0_12], %12 {strides = array<i32>} : memref<128x128xf32, #tpu.memory_space<vmem>>, vector<128x128xf32>,
    } else {
    }
    %c0 = arith.constant 0 : index
    %c0_1 = arith.constant 0 : index
    %3 = vector.load %arg7[%c0, %c0_1] : memref<128x128xf32, #tpu.memory_space<vmem>>, vector<128x128xf32>
    %c0_2 = arith.constant 0 : index
    %c0_3 = arith.constant 0 : index
    %4 = vector.load %arg3[%c0_2, %c0_3] : memref<128x256xbf16, #tpu.memory_space<vmem>>, vector<128x256xbf16>
    %c0_4 = arith.constant 0 : index
    %c0_5 = arith.constant 0 : index
    %5 = vector.load %arg4[%c0_4, %c0_5] : memref<256x128xbf16, #tpu.memory_space<vmem>>, vector<256x128xbf16>
    %cst = arith.constant dense<0.000000e+00> : vector<128x128xf32>
    %6 = tpu.matmul %4, %5, %cst {dimension_numbers = #tpu.dot_dimension_numbers<[1], [0], [0], [1], [0, 0, 1, 1], [], []>} : vector<128x256xbf16>, vector<256x128xbf16>, vector<128x128xf32> -> vector<128x128xf32>
    %7 = arith.addf %3, %6 : vector<128x128xf32>
    %c0_6 = arith.constant 0 : index
    %c0_7 = arith.constant 0 : index
    %8 = vector.load %arg7[%c0_6, %c0_7] : memref<128x128xf32, #tpu.memory_space<vmem>>, vector<128x128xf32>
    tpu.vector_store %arg7[%c0_6, %c0_7], %7 {strides = array<i32>} : memref<128x128xf32, #tpu.memory_space<vmem>>, vector<128x128xf32>,
    %c0_i32_8 = arith.constant 0 : i32
    %9 = arith.cmpi eq, %arg2, %c0_i32_8 : i32
    %10 = arith.extui %9 : i1 to i32
    %c0_i32_9 = arith.constant 0 : i32
    %11 = arith.cmpi ne, %10, %c0_i32_9 : i32
    scf.if %11 {
      %c0_10 = arith.constant 0 : index
      %c0_11 = arith.constant 0 : index
      %12 = vector.load %arg7[%c0_10, %c0_11] : memref<128x128xf32, #tpu.memory_space<vmem>>, vector<128x128xf32>
      %c0_12 = arith.constant 0 : index
      %c0_13 = arith.constant 0 : index
      %13 = vector.load %arg5[%c0_12, %c0_13] : memref<1x128xf32, #tpu.memory_space<vmem>>, vector<1x128xf32>
      %14 = vector.broadcast %13 : vector<1x128xf32> to vector<128x128xf32>
      %15 = arith.addf %12, %14 : vector<128x128xf32>
      %cst_14 = arith.constant 0.000000e+00 : f32
      %16 = vector.broadcast %cst_14 : f32 to vector<128x128xf32>
      %17 = arith.maximumf %15, %16 : vector<128x128xf32>
      %18 = arith.truncf %17 : vector<128x128xf32> to vector<128x128xbf16>
      %c0_15 = arith.constant 0 : index
      %c0_16 = arith.constant 0 : index
      %19 = vector.load %arg6[%c0_15, %c0_16] : memref<128x128xbf16, #tpu.memory_space<vmem>>, vector<128x128xbf16>
      tpu.vector_store %arg6[%c0_15, %c0_16], %18 {strides = array<i32>} : memref<128x128xbf16, #tpu.memory_space<vmem>>, vector<128x128xbf16>,
    } else {
    }
    return
  }
  func.func @transform_0(%arg0: i32, %arg1: i32, %arg2: i32) -> (i32, i32) {
    %c0_i32 = arith.constant 0 : i32
    return %arg0, %arg2 : i32, i32
  }
  func.func @transform_1(%arg0: i32, %arg1: i32, %arg2: i32) -> (i32, i32) {
    %c0_i32 = arith.constant 0 : i32
    return %arg2, %arg1 : i32, i32
  }
  func.func @transform_2(%arg0: i32, %arg1: i32, %arg2: i32) -> (i32, i32) {
    %c0_i32 = arith.constant 0 : i32
    %c0_i32_0 = arith.constant 0 : i32
    return %c0_i32, %arg1 : i32, i32
  }
  func.func @transform_3(%arg0: i32, %arg1: i32, %arg2: i32) -> (i32, i32) {
    %c0_i32 = arith.constant 0 : i32
    return %arg0, %arg1 : i32, i32
  }
}

</mosaic_0001>

<llo_original>
// kernel: tpu_custom_call.1
$region0: #{tpu_custom_call.1}
  #allocation0 [shape = 'u32[]', space=smem, size = 0x4, offset = 0x4, fixed_abs, tag = 'smem constant byte address 0x4 - core index']
  #allocation1 [shape = 'u32[144,128]{1,0:T(1,128)}', space=vmem, size = 0x12000, scoped, tag = 'internal scratch']
  #allocation2 [shape = 'f32[128,128]{1,0:T(8,128)}', space=vmem, size = 0x10000, scoped, tag = 'scratch operand']
  %s0 = inlined_call_operand.hbm [shape: bf16[128,256], index: 0, kind: input, shape index: {}]
  %s1 = inlined_call_operand.hbm [shape: bf16[256,128], index: 1, kind: input, shape index: {}]
  %s2 = inlined_call_operand.vmem [shape: f32[1,128], index: 2, kind: input, shape index: {}]
  %s3 = inlined_call_operand.hbm [shape: bf16[128,128], index: 3, kind: output, shape index: {}]
  %s4 = sld [smem:[#allocation0]]
  $region38: #{tpu_custom_call.1} parent=0
    _
  %s6 = ssub.s32 1, %s4
  %s7 = scalar_select 0, %s6, %s4
  $region1: #{tpu_custom_call.1} parent=0
    #allocation3 [shape = 'u8[65536]{0}', space=vmem, size = 0x10000, scoped, tag = 'input window, operand 0, single buffered']
    #allocation4 [shape = 's32[1]{0}', space=sflag, size = 0x4, scoped, tag = 'scoped memory for tpu_custom_call.1']
    #allocation5 [shape = 's32[1]{0}', space=sflag, size = 0x4, scoped, tag = 'scoped memory for tpu_custom_call.1']
    #allocation6 [shape = 'u8[65536]{0}', space=vmem, size = 0x10000, scoped, tag = 'input window, operand 1, single buffered']
    #allocation7 [shape = 's32[1]{0}', space=sflag, size = 0x4, scoped, tag = 'scoped memory for tpu_custom_call.1']
    #allocation8 [shape = 'u8[32768]{0}', space=vmem, size = 0x8000, scoped, tag = 'output window, operand 0, single buffered']
    %8 = vsyncpa [#allocation4], 0
    %9 = vsyncpa [#allocation7], 0
    %10 = vsyncpa [#allocation5], 0
    // Predicated region
    $region2: #{tpu_custom_call.1} parent=1 // pred_check
      _
    $region3: #{tpu_custom_call.1} parent=1 // pred_check_branch
      %12 = sbr.rel (0) target = $region5
    $region4: #{tpu_custom_call.1} parent=1 // pred_region
      %s14 = ssub.s32 2048, 2048
      %15 = vsyncadd [#allocation4], %s14
      %s16 = sshll.u32 [#allocation3], 4
      %s17 = int_to_ptr.vmem [resolvable:$true] %s16
      %22 = dma.hbm_to_vmem [thread:$0]  %s0, 2048, %s17, [#allocation4], 128, 128, 8
    $region5: #{tpu_custom_call.1} parent=1 // pred_fallthru
      _
    // Predicated region
    $region6: #{tpu_custom_call.1} parent=1 // pred_check
      _
    $region7: #{tpu_custom_call.1} parent=1 // pred_check_branch
      %24 = sbr.rel (0) target = $region9
    $region8: #{tpu_custom_call.1} parent=1 // pred_region
      %s26 = ssub.s32 2048, 2048
      %27 = vsyncadd [#allocation7], %s26
      %s28 = sshll.u32 [#allocation6], 4
      %s29 = int_to_ptr.vmem [resolvable:$true] %s28
      %34 = dma.hbm_to_vmem [thread:$0]  %s1, 2048, %s29, [#allocation7], 64, 64, 4
    $region9: #{tpu_custom_call.1} parent=1 // pred_fallthru
      _
    // Predicated region
    $region10: #{tpu_custom_call.1} parent=1 // pred_check
      _
    $region11: #{tpu_custom_call.1} parent=1 // pred_check_branch
      %36 = sbr.rel (0) target = $region13
    $region12: #{tpu_custom_call.1} parent=1 // pred_region
      _
    $region13: #{tpu_custom_call.1} parent=1 // pred_fallthru
      _
    // Predicated region
    $region14: #{tpu_custom_call.1} parent=1 // pred_check
      _
    $region15: #{tpu_custom_call.1} parent=1 // pred_check_branch
      %38 = sbr.rel (0) target = $region17
    $region16: #{tpu_custom_call.1} parent=1 // pred_region
      %39 = dma.done [#allocation4], 2048
    $region17: #{tpu_custom_call.1} parent=1 // pred_fallthru
      _
    // Predicated region
    $region18: #{tpu_custom_call.1} parent=1 // pred_check
      _
    $region19: #{tpu_custom_call.1} parent=1 // pred_check_branch
      %41 = sbr.rel (0) target = $region21
    $region20: #{tpu_custom_call.1} parent=1 // pred_region
      %42 = dma.done [#allocation7], 2048
    $region21: #{tpu_custom_call.1} parent=1 // pred_fallthru
      _
    %p44 = scmp.eq.s32.totalorder 0, 0
    // Predicated region
    $region22: #{tpu_custom_call.1} parent=1 // pred_check
      %p45 = pneg %p44
    $region23: #{tpu_custom_call.1} parent=1 // pred_check_branch
      %47 = sbr.rel (%p45) target = $region25
    $region24: #{tpu_custom_call.1} parent=1 // pred_region
      %48 = vst [vmem:[#allocation2] sm:$0xff] 0.0
      %49 = vst [vmem:[#allocation2 + $0x8] sm:$0xff] 0.0
      %50 = vst [vmem:[#allocation2 + $0x10] sm:$0xff] 0.0
      %51 = vst [vmem:[#allocation2 + $0x18] sm:$0xff] 0.0
      %52 = vst [vmem:[#allocation2 + $0x20] sm:$0xff] 0.0
      %53 = vst [vmem:[#allocation2 + $0x28] sm:$0xff] 0.0
      %54 = vst [vmem:[#allocation2 + $0x30] sm:$0xff] 0.0
      %55 = vst [vmem:[#allocation2 + $0x38] sm:$0xff] 0.0
      %56 = vst [vmem:[#allocation2 + $0x40] sm:$0xff] 0.0
      %57 = vst [vmem:[#allocation2 + $0x48] sm:$0xff] 0.0
      %58 = vst [vmem:[#allocation2 + $0x50] sm:$0xff] 0.0
      %59 = vst [vmem:[#allocation2 + $0x58] sm:$0xff] 0.0
      %60 = vst [vmem:[#allocation2 + $0x60] sm:$0xff] 0.0
      %61 = vst [vmem:[#allocation2 + $0x68] sm:$0xff] 0.0
      %62 = vst [vmem:[#allocation2 + $0x70] sm:$0xff] 0.0
      %63 = vst [vmem:[#allocation2 + $0x78] sm:$0xff] 0.0
    $region25: #{tpu_custom_call.1} parent=1 // pred_fallthru
      _
    %v64 = vld [vmem:[#allocation2] sm:$0xff]
    %v65 = vld [vmem:[#allocation2 + $0x8] sm:$0xff]
    %v66 = vld [vmem:[#allocation2 + $0x10] sm:$0xff]
    %v67 = vld [vmem:[#allocation2 + $0x18] sm:$0xff]
    %v68 = vld [vmem:[#allocation2 + $0x20] sm:$0xff]
    %v69 = vld [vmem:[#allocation2 + $0x28] sm:$0xff]
    %v70 = vld [vmem:[#allocation2 + $0x30] sm:$0xff]
    %v71 = vld [vmem:[#allocation2 + $0x38] sm:$0xff]
    %v72 = vld [vmem:[#allocation2 + $0x40] sm:$0xff]
    %v73 = vld [vmem:[#allocation2 + $0x48] sm:$0xff]
    %v74 = vld [vmem:[#allocation2 + $0x50] sm:$0xff]
    %v75 = vld [vmem:[#allocation2 + $0x58] sm:$0xff]
    %v76 = vld [vmem:[#allocation2 + $0x60] sm:$0xff]
    %v77 = vld [vmem:[#allocation2 + $0x68] sm:$0xff]
    %v78 = vld [vmem:[#allocation2 + $0x70] sm:$0xff]
    %v79 = vld [vmem:[#allocation2 + $0x78] sm:$0xff]
    %v80 = vld [vmem:[#allocation3] sm:$0xff]
    %v81 = vld [vmem:[#allocation3 + $0x8] sm:$0xff]
    %v82 = vld [vmem:[#allocation3 + $0x10] sm:$0xff]
    %v83 = vld [vmem:[#allocation3 + $0x18] sm:$0xff]
    %v84 = vld [vmem:[#allocation3 + $0x20] sm:$0xff]
    %v85 = vld [vmem:[#allocation3 + $0x28] sm:$0xff]
    %v86 = vld [vmem:[#allocation3 + $0x30] sm:$0xff]
    %v87 = vld [vmem:[#allocation3 + $0x38] sm:$0xff]
    %v88 = vld [vmem:[#allocation3 + $0x40] sm:$0xff]
    %v89 = vld [vmem:[#allocation3 + $0x48] sm:$0xff]
    %v90 = vld [vmem:[#allocation3 + $0x50] sm:$0xff]
    %v91 = vld [vmem:[#allocation3 + $0x58] sm:$0xff]
    %v92 = vld [vmem:[#allocation3 + $0x60] sm:$0xff]
    %v93 = vld [vmem:[#allocation3 + $0x68] sm:$0xff]
    %v94 = vld [vmem:[#allocation3 + $0x70] sm:$0xff]
    %v95 = vld [vmem:[#allocation3 + $0x78] sm:$0xff]
    %v96 = vld [vmem:[#allocation6] sm:$0xf]
    %v97 = vld [vmem:[#allocation6 + $0x4] sm:$0xf]
    %v98 = vld [vmem:[#allocation6 + $0x8] sm:$0xf]
    %v99 = vld [vmem:[#allocation6 + $0xc] sm:$0xf]
    %v100 = vld [vmem:[#allocation6 + $0x10] sm:$0xf]
    %v101 = vld [vmem:[#allocation6 + $0x14] sm:$0xf]
    %v102 = vld [vmem:[#allocation6 + $0x18] sm:$0xf]
    %v103 = vld [vmem:[#allocation6 + $0x1c] sm:$0xf]
    %v104 = vld [vmem:[#allocation6 + $0x20] sm:$0xf]
    %v105 = vld [vmem:[#allocation6 + $0x24] sm:$0xf]
    %v106 = vld [vmem:[#allocation6 + $0x28] sm:$0xf]
    %v107 = vld [vmem:[#allocation6 + $0x2c] sm:$0xf]
    %v108 = vld [vmem:[#allocation6 + $0x30] sm:$0xf]
    %v109 = vld [vmem:[#allocation6 + $0x34] sm:$0xf]
    %v110 = vld [vmem:[#allocation6 + $0x38] sm:$0xf]
    %v111 = vld [vmem:[#allocation6 + $0x3c] sm:$0xf]
    %v112 = vld [vmem:[#allocation6 + $0x40] sm:$0xf]
    %v113 = vld [vmem:[#allocation6 + $0x44] sm:$0xf]
    %v114 = vld [vmem:[#allocation6 + $0x48] sm:$0xf]
    %v115 = vld [vmem:[#allocation6 + $0x4c] sm:$0xf]
    %v116 = vld [vmem:[#allocation6 + $0x50] sm:$0xf]
    %v117 = vld [vmem:[#allocation6 + $0x54] sm:$0xf]
    %v118 = vld [vmem:[#allocation6 + $0x58] sm:$0xf]
    %v119 = vld [vmem:[#allocation6 + $0x5c] sm:$0xf]
    %v120 = vld [vmem:[#allocation6 + $0x60] sm:$0xf]
    %v121 = vld [vmem:[#allocation6 + $0x64] sm:$0xf]
    %v122 = vld [vmem:[#allocation6 + $0x68] sm:$0xf]
    %v123 = vld [vmem:[#allocation6 + $0x6c] sm:$0xf]
    %v124 = vld [vmem:[#allocation6 + $0x70] sm:$0xf]
    %v125 = vld [vmem:[#allocation6 + $0x74] sm:$0xf]
    %v126 = vld [vmem:[#allocation6 + $0x78] sm:$0xf]
    %v127 = vld [vmem:[#allocation6 + $0x7c] sm:$0xf]
    %v144 = vunpack.c.l.b16 %v80
    %v145 = vunpack.c.h.b16 %v80
    %v146 = vunpack.c.l.b16 %v81
    %v147 = vunpack.c.h.b16 %v81
    %v148 = vunpack.c.l.b16 %v82
    %v149 = vunpack.c.h.b16 %v82
    %v150 = vunpack.c.l.b16 %v83
    %v151 = vunpack.c.h.b16 %v83
    %v152 = vunpack.c.l.b16 %v84
    %v153 = vunpack.c.h.b16 %v84
    %v154 = vunpack.c.l.b16 %v85
    %v155 = vunpack.c.h.b16 %v85
    %v156 = vunpack.c.l.b16 %v86
    %v157 = vunpack.c.h.b16 %v86
    %v158 = vunpack.c.l.b16 %v87
    %v159 = vunpack.c.h.b16 %v87
    %v160 = vunpack.c.l.b16 %v88
    %v161 = vunpack.c.h.b16 %v88
    %v162 = vunpack.c.l.b16 %v89
    %v163 = vunpack.c.h.b16 %v89
    %v164 = vunpack.c.l.b16 %v90
    %v165 = vunpack.c.h.b16 %v90
    %v166 = vunpack.c.l.b16 %v91
    %v167 = vunpack.c.h.b16 %v91
    %v168 = vunpack.c.l.b16 %v92
    %v169 = vunpack.c.h.b16 %v92
    %v170 = vunpack.c.l.b16 %v93
    %v171 = vunpack.c.h.b16 %v93
    %v172 = vunpack.c.l.b16 %v94
    %v173 = vunpack.c.h.b16 %v94
    %v174 = vunpack.c.l.b16 %v95
    %v175 = vunpack.c.h.b16 %v95
    %v176 = vpack.c.b16 %v146, %v144
    %v177 = vpack.c.b16 %v147, %v145
    %v178 = vpack.c.b16 %v150, %v148
    %v179 = vpack.c.b16 %v151, %v149
    %v180 = vpack.c.b16 %v154, %v152
    %v181 = vpack.c.b16 %v155, %v153
    %v182 = vpack.c.b16 %v158, %v156
    %v183 = vpack.c.b16 %v159, %v157
    %v184 = vpack.c.b16 %v162, %v160
    %v185 = vpack.c.b16 %v163, %v161
    %v186 = vpack.c.b16 %v166, %v164
    %v187 = vpack.c.b16 %v167, %v165
    %v188 = vpack.c.b16 %v170, %v168
    %v189 = vpack.c.b16 %v171, %v169
    %v190 = vpack.c.b16 %v174, %v172
    %v191 = vpack.c.b16 %v175, %v173
    %v240 = vunpack.c.l.b16 %v96
    %v241 = vunpack.c.l.b16 %v97
    %v242 = vunpack.c.l.b16 %v98
    %v243 = vunpack.c.l.b16 %v99
    %v244 = vunpack.c.l.b16 %v100
    %v245 = vunpack.c.l.b16 %v101
    %v246 = vunpack.c.l.b16 %v102
    %v247 = vunpack.c.l.b16 %v103
    %v248 = vunpack.c.l.b16 %v104
    %v249 = vunpack.c.l.b16 %v105
    %v250 = vunpack.c.l.b16 %v106
    %v251 = vunpack.c.l.b16 %v107
    %v252 = vunpack.c.l.b16 %v108
    %v253 = vunpack.c.l.b16 %v109
    %v254 = vunpack.c.l.b16 %v110
    %v255 = vunpack.c.l.b16 %v111
    %v256 = vunpack.c.l.b16 %v112
    %v257 = vunpack.c.l.b16 %v113
    %v258 = vunpack.c.l.b16 %v114
    %v259 = vunpack.c.l.b16 %v115
    %v260 = vunpack.c.l.b16 %v116
    %v261 = vunpack.c.l.b16 %v117
    %v262 = vunpack.c.l.b16 %v118
    %v263 = vunpack.c.l.b16 %v119
    %v264 = vunpack.c.l.b16 %v120
    %v265 = vunpack.c.l.b16 %v121
    %v266 = vunpack.c.l.b16 %v122
    %v267 = vunpack.c.l.b16 %v123
    %v268 = vunpack.c.l.b16 %v124
    %v269 = vunpack.c.l.b16 %v125
    %v270 = vunpack.c.l.b16 %v126
    %v271 = vunpack.c.l.b16 %v127
    %v272 = vpack.c.b16 %v241, %v240
    %v273 = vpack.c.b16 %v243, %v242
    %v274 = vpack.c.b16 %v245, %v244
    %v275 = vpack.c.b16 %v247, %v246
    %v276 = vpack.c.b16 %v249, %v248
    %v277 = vpack.c.b16 %v251, %v250
    %v278 = vpack.c.b16 %v253, %v252
    %v279 = vpack.c.b16 %v255, %v254
    %v280 = vpack.c.b16 %v257, %v256
    %v281 = vpack.c.b16 %v259, %v258
    %v282 = vpack.c.b16 %v261, %v260
    %v283 = vpack.c.b16 %v263, %v262
    %v284 = vpack.c.b16 %v265, %v264
    %v285 = vpack.c.b16 %v267, %v266
    %v286 = vpack.c.b16 %v269, %v268
    %v287 = vpack.c.b16 %v271, %v270
    %304 = vmatprep.subr.bf16.mxu0 0
    %305 = vmatpush1.bf16.msra.mxu0 %v279
    %306 = vmatprep.subr.bf16.mxu0 0
    %307 = vmatpush1.bf16.msra.mxu0 %v278
    %308 = vmatprep.subr.bf16.mxu0 0
    %309 = vmatpush1.bf16.msra.mxu0 %v277
    %310 = vmatprep.subr.bf16.mxu0 0
    %311 = vmatpush1.bf16.msra.mxu0 %v276
    %312 = vmatprep.subr.bf16.mxu0 0
    %313 = vmatpush1.bf16.msra.mxu0 %v275
    %314 = vmatprep.subr.bf16.mxu0 0
    %315 = vmatpush1.bf16.msra.mxu0 %v274
    %316 = vmatprep.subr.bf16.mxu0 0
    %317 = vmatpush1.bf16.msra.mxu0 %v273
    %318 = vmatprep.subr.bf16.mxu0 0
    %319 = vmatpush1.bf16.msra.mxu0 %v272
    %320 = vmatprep.subr.bf16.mxu0 0
    %321 = vmatpush2.bf16.msra.mxu0 %v287
    %322 = vmatprep.subr.bf16.mxu0 0
    %323 = vmatpush2.bf16.msra.mxu0 %v286
    %324 = vmatprep.subr.bf16.mxu0 0
    %325 = vmatpush2.bf16.msra.mxu0 %v285
    %326 = vmatprep.subr.bf16.mxu0 0
    %327 = vmatpush2.bf16.msra.mxu0 %v284
    %328 = vmatprep.subr.bf16.mxu0 0
    %329 = vmatpush2.bf16.msra.mxu0 %v283
    %330 = vmatprep.subr.bf16.mxu0 0
    %331 = vmatpush2.bf16.msra.mxu0 %v282
    %332 = vmatprep.subr.bf16.mxu0 0
    %333 = vmatpush2.bf16.msra.mxu0 %v281
    %334 = vmatprep.subr.bf16.mxu0 0
    %335 = vmatpush2.bf16.msra.mxu0 %v280
    %336 = vmatprep.mubr.bf16.mxu0 %v177
    %337 = vmatmul.mubr.bf16.gmra.mxu0 %v176
    %v338 = vpop.f32.mrf.mxu0
    %v339 = vadd.f32 0.0, %v338
    %v340 = vpop.f32.mrf.mxu0
    %v341 = vpop.f32.mrf.mxu0
    %v342 = vadd.f32 0.0, %v341
    %v343 = vpop.f32.mrf.mxu0
    %344 = vmatprep.mubr.bf16.mxu0 %v179
    %345 = vmatmul.mubr.bf16.gmra.mxu0 %v178
    %v346 = vpop.f32.mrf.mxu0
    %v347 = vadd.f32 0.0, %v346
    %v348 = vpop.f32.mrf.mxu0
    %v349 = vpop.f32.mrf.mxu0
    %v350 = vadd.f32 0.0, %v349
    %v351 = vpop.f32.mrf.mxu0
    %352 = vmatprep.mubr.bf16.mxu0 %v181
    %353 = vmatmul.mubr.bf16.gmra.mxu0 %v180
    %v354 = vpop.f32.mrf.mxu0
    %v355 = vadd.f32 0.0, %v354
    %v356 = vpop.f32.mrf.mxu0
    %v357 = vpop.f32.mrf.mxu0
    %v358 = vadd.f32 0.0, %v357
    %v359 = vpop.f32.mrf.mxu0
    %360 = vmatprep.mubr.bf16.mxu0 %v183
    %361 = vmatmul.mubr.bf16.gmra.mxu0 %v182
    %v362 = vpop.f32.mrf.mxu0
    %v363 = vadd.f32 0.0, %v362
    %v364 = vpop.f32.mrf.mxu0
    %v365 = vpop.f32.mrf.mxu0
    %v366 = vadd.f32 0.0, %v365
    %v367 = vpop.f32.mrf.mxu0
    %368 = vmatprep.mubr.bf16.mxu0 %v185
    %369 = vmatmul.mubr.bf16.gmra.mxu0 %v184
    %v370 = vpop.f32.mrf.mxu0
    %v371 = vadd.f32 0.0, %v370
    %v372 = vpop.f32.mrf.mxu0
    %v373 = vpop.f32.mrf.mxu0
    %v374 = vadd.f32 0.0, %v373
    %v375 = vpop.f32.mrf.mxu0
    %376 = vmatprep.mubr.bf16.mxu0 %v187
    %377 = vmatmul.mubr.bf16.gmra.mxu0 %v186
    %v378 = vpop.f32.mrf.mxu0
    %v379 = vadd.f32 0.0, %v378
    %v380 = vpop.f32.mrf.mxu0
    %v381 = vpop.f32.mrf.mxu0
    %v382 = vadd.f32 0.0, %v381
    %v383 = vpop.f32.mrf.mxu0
    %384 = vmatprep.mubr.bf16.mxu0 %v189
    %385 = vmatmul.mubr.bf16.gmra.mxu0 %v188
    %v386 = vpop.f32.mrf.mxu0
    %v387 = vadd.f32 0.0, %v386
    %v388 = vpop.f32.mrf.mxu0
    %v389 = vpop.f32.mrf.mxu0
    %v390 = vadd.f32 0.0, %v389
    %v391 = vpop.f32.mrf.mxu0
    %392 = vmatprep.mubr.bf16.mxu0 %v191
    %393 = vmatmul.mubr.bf16.gmra.mxu0 %v190
    %v394 = vpop.f32.mrf.mxu0
    %v395 = vadd.f32 0.0, %v394
    %v396 = vpop.f32.mrf.mxu0
    %v397 = vpop.f32.mrf.mxu0
    %v398 = vadd.f32 0.0, %v397
    %v399 = vpop.f32.mrf.mxu0
    %400 = vdwg.mxu0
    %v401 = vadd.f32 %v64, %v339
    %v402 = vadd.f32 %v65, %v342
    %v403 = vadd.f32 %v66, %v347
    %v404 = vadd.f32 %v67, %v350
    %v405 = vadd.f32 %v68, %v355
    %v406 = vadd.f32 %v69, %v358
    %v407 = vadd.f32 %v70, %v363
    %v408 = vadd.f32 %v71, %v366
    %v409 = vadd.f32 %v72, %v371
    %v410 = vadd.f32 %v73, %v374
    %v411 = vadd.f32 %v74, %v379
    %v412 = vadd.f32 %v75, %v382
    %v413 = vadd.f32 %v76, %v387
    %v414 = vadd.f32 %v77, %v390
    %v415 = vadd.f32 %v78, %v395
    %v416 = vadd.f32 %v79, %v398
    %417 = vst [vmem:[#allocation2] sm:$0xff] %v401
    %418 = vst [vmem:[#allocation2 + $0x8] sm:$0xff] %v402
    %419 = vst [vmem:[#allocation2 + $0x10] sm:$0xff] %v403
    %420 = vst [vmem:[#allocation2 + $0x18] sm:$0xff] %v404
    %421 = vst [vmem:[#allocation2 + $0x20] sm:$0xff] %v405
    %422 = vst [vmem:[#allocation2 + $0x28] sm:$0xff] %v406
    %423 = vst [vmem:[#allocation2 + $0x30] sm:$0xff] %v407
    %424 = vst [vmem:[#allocation2 + $0x38] sm:$0xff] %v408
    %425 = vst [vmem:[#allocation2 + $0x40] sm:$0xff] %v409
    %426 = vst [vmem:[#allocation2 + $0x48] sm:$0xff] %v410
    %427 = vst [vmem:[#allocation2 + $0x50] sm:$0xff] %v411
    %428 = vst [vmem:[#allocation2 + $0x58] sm:$0xff] %v412
    %429 = vst [vmem:[#allocation2 + $0x60] sm:$0xff] %v413
    %430 = vst [vmem:[#allocation2 + $0x68] sm:$0xff] %v414
    %431 = vst [vmem:[#allocation2 + $0x70] sm:$0xff] %v415
    %432 = vst [vmem:[#allocation2 + $0x78] sm:$0xff] %v416
    // Predicated region
    $region26: #{tpu_custom_call.1} parent=1 // pred_check
      %p433 = pneg %p44
    $region27: #{tpu_custom_call.1} parent=1 // pred_check_branch
      %435 = sbr.rel (%p433) target = $region29
    $region28: #{tpu_custom_call.1} parent=1 // pred_region
      %v436 = vld [vmem:[#allocation2] sm:$0xff]
      %v437 = vld [vmem:[#allocation2 + $0x8] sm:$0xff]
      %v438 = vld [vmem:[#allocation2 + $0x10] sm:$0xff]
      %v439 = vld [vmem:[#allocation2 + $0x18] sm:$0xff]
      %v440 = vld [vmem:[#allocation2 + $0x20] sm:$0xff]
      %v441 = vld [vmem:[#allocation2 + $0x28] sm:$0xff]
      %v442 = vld [vmem:[#allocation2 + $0x30] sm:$0xff]
      %v443 = vld [vmem:[#allocation2 + $0x38] sm:$0xff]
      %v444 = vld [vmem:[#allocation2 + $0x40] sm:$0xff]
      %v445 = vld [vmem:[#allocation2 + $0x48] sm:$0xff]
      %v446 = vld [vmem:[#allocation2 + $0x50] sm:$0xff]
      %v447 = vld [vmem:[#allocation2 + $0x58] sm:$0xff]
      %v448 = vld [vmem:[#allocation2 + $0x60] sm:$0xff]
      %v449 = vld [vmem:[#allocation2 + $0x68] sm:$0xff]
      %v450 = vld [vmem:[#allocation2 + $0x70] sm:$0xff]
      %v451 = vld [vmem:[#allocation2 + $0x78] sm:$0xff]
      %v452 = vld [vmem:[%s2] sm:$0x1]
      %v454 = vlaneseq
      %v455 = vshrl.u32 %v454, 7
      %v456 = vsub.s32 0, %v455
      %v457 = vrot.slane %v452, %v456
      %v459 = vadd.f32 %v436, %v457
      %v460 = vadd.f32 %v437, %v457
      %v461 = vadd.f32 %v438, %v457
      %v462 = vadd.f32 %v439, %v457
      %v463 = vadd.f32 %v440, %v457
      %v464 = vadd.f32 %v441, %v457
      %v465 = vadd.f32 %v442, %v457
      %v466 = vadd.f32 %v443, %v457
      %v467 = vadd.f32 %v444, %v457
      %v468 = vadd.f32 %v445, %v457
      %v469 = vadd.f32 %v446, %v457
      %v470 = vadd.f32 %v447, %v457
      %v471 = vadd.f32 %v448, %v457
      %v472 = vadd.f32 %v449, %v457
      %v473 = vadd.f32 %v450, %v457
      %v474 = vadd.f32 %v451, %v457
      %v475 = vmax.f32 %v459, 0.0
      %v476 = vmax.f32 %v460, 0.0
      %v477 = vmax.f32 %v461, 0.0
      %v478 = vmax.f32 %v462, 0.0
      %v479 = vmax.f32 %v463, 0.0
      %v480 = vmax.f32 %v464, 0.0
      %v481 = vmax.f32 %v465, 0.0
      %v482 = vmax.f32 %v466, 0.0
      %v483 = vmax.f32 %v467, 0.0
      %v484 = vmax.f32 %v468, 0.0
      %v485 = vmax.f32 %v469, 0.0
      %v486 = vmax.f32 %v470, 0.0
      %v487 = vmax.f32 %v471, 0.0
      %v488 = vmax.f32 %v472, 0.0
      %v489 = vmax.f32 %v473, 0.0
      %v490 = vmax.f32 %v474, 0.0
      %v491 = vpack.c.bf16 %v476, %v475
      %v492 = vpack.c.bf16 %v478, %v477
      %v493 = vpack.c.bf16 %v480, %v479
      %v494 = vpack.c.bf16 %v482, %v481
      %v495 = vpack.c.bf16 %v484, %v483
      %v496 = vpack.c.bf16 %v486, %v485
      %v497 = vpack.c.bf16 %v488, %v487
      %v498 = vpack.c.bf16 %v490, %v489
      %v507 = vunpack.c.l.b16 %v491
      %v508 = vunpack.c.h.b16 %v491
      %v509 = vunpack.c.l.b16 %v492
      %v510 = vunpack.c.h.b16 %v492
      %v511 = vunpack.c.l.b16 %v493
      %v512 = vunpack.c.h.b16 %v493
      %v513 = vunpack.c.l.b16 %v494
      %v514 = vunpack.c.h.b16 %v494
      %v515 = vunpack.c.l.b16 %v495
      %v516 = vunpack.c.h.b16 %v495
      %v517 = vunpack.c.l.b16 %v496
      %v518 = vunpack.c.h.b16 %v496
      %v519 = vunpack.c.l.b16 %v497
      %v520 = vunpack.c.h.b16 %v497
      %v521 = vunpack.c.l.b16 %v498
      %v522 = vunpack.c.h.b16 %v498
      %v523 = vpack.c.b16 %v507, %v507
      %v524 = vpack.c.b16 %v508, %v508
      %v525 = vpack.c.b16 %v509, %v509
      %v526 = vpack.c.b16 %v510, %v510
      %v527 = vpack.c.b16 %v511, %v511
      %v528 = vpack.c.b16 %v512, %v512
      %v529 = vpack.c.b16 %v513, %v513
      %v530 = vpack.c.b16 %v514, %v514
      %v531 = vpack.c.b16 %v515, %v515
      %v532 = vpack.c.b16 %v516, %v516
      %v533 = vpack.c.b16 %v517, %v517
      %v534 = vpack.c.b16 %v518, %v518
      %v535 = vpack.c.b16 %v519, %v519
      %v536 = vpack.c.b16 %v520, %v520
      %v537 = vpack.c.b16 %v521, %v521
      %v538 = vpack.c.b16 %v522, %v522
      %555 = vst [vmem:[#allocation8] sm:$0xf] %v523
      %556 = vst [vmem:[#allocation8 + $0x4] sm:$0xf] %v524
      %557 = vst [vmem:[#allocation8 + $0x8] sm:$0xf] %v525
      %558 = vst [vmem:[#allocation8 + $0xc] sm:$0xf] %v526
      %559 = vst [vmem:[#allocation8 + $0x10] sm:$0xf] %v527
      %560 = vst [vmem:[#allocation8 + $0x14] sm:$0xf] %v528
      %561 = vst [vmem:[#allocation8 + $0x18] sm:$0xf] %v529
      %562 = vst [vmem:[#allocation8 + $0x1c] sm:$0xf] %v530
      %563 = vst [vmem:[#allocation8 + $0x20] sm:$0xf] %v531
      %564 = vst [vmem:[#allocation8 + $0x24] sm:$0xf] %v532
      %565 = vst [vmem:[#allocation8 + $0x28] sm:$0xf] %v533
      %566 = vst [vmem:[#allocation8 + $0x2c] sm:$0xf] %v534
      %567 = vst [vmem:[#allocation8 + $0x30] sm:$0xf] %v535
      %568 = vst [vmem:[#allocation8 + $0x34] sm:$0xf] %v536
      %569 = vst [vmem:[#allocation8 + $0x38] sm:$0xf] %v537
      %570 = vst [vmem:[#allocation8 + $0x3c] sm:$0xf] %v538
    $region29: #{tpu_custom_call.1} parent=1 // pred_fallthru
      _
    // Predicated region
    $region30: #{tpu_custom_call.1} parent=1 // pred_check
      _
    $region31: #{tpu_custom_call.1} parent=1 // pred_check_branch
      %572 = sbr.rel (0) target = $region33
    $region32: #{tpu_custom_call.1} parent=1 // pred_region
      %s574 = ssub.s32 1024, 1024
      %575 = vsyncadd [#allocation5], %s574
      %s576 = sshll.u32 [#allocation8], 4
      %s577 = int_to_ptr.vmem [resolvable:$true] %s576
      %582 = dma.vmem_to_hbm [thread:$0]  %s577, 1024, %s3, [#allocation5], 64, 64, 4
    $region33: #{tpu_custom_call.1} parent=1 // pred_fallthru
      _
    // Predicated region
    $region34: #{tpu_custom_call.1} parent=1 // pred_check
      _
    $region35: #{tpu_custom_call.1} parent=1 // pred_check_branch
      %584 = sbr.rel (0) target = $region37
    $region36: #{tpu_custom_call.1} parent=1 // pred_region
      %585 = dma.done [#allocation5], 1024
    $region37: #{tpu_custom_call.1} parent=1 // pred_fallthru
      _
    %586 = vsyncpa [#allocation4], 1
    %587 = vsyncpa [#allocation7], 1
    %588 = vsyncpa [#allocation5], 1

</llo_original>
